<compile_context>
chip_gen: v7x
topology: tpu7x:2x2x1
jax: 0.10.0
libtpu: 0.0.40
codegen_flags: <defaults>
</compile_context>

<pallas_src>
import jax
import jax.numpy as jnp
from jax import lax
from jax.experimental import pallas as pl
from jax.experimental.pallas import tpu as pltpu

_LANES = 128
_MAX_BLOCK_ROWS = 2048    # 2048x128 f32 = 1 MiB per input block per buffer
_SPLIT_MIN_ROWS = 256     # engage both TensorCores (v7x) above ~32K elements
_PAD_LOGIT = -30000.0     # loss(x=-30000, t=0) == 0 exactly in f32 (fits f16/bf16 too)


def _round_up(a, b):
    return ((a + b - 1) // b) * b


def _cdiv(a, b):
    return -(-a // b)


def _sublane(dtype):
    # Native sublane tile per element width (8-bit: 32, 16-bit: 16, else 8).
    return {1: 32, 2: 16}.get(jnp.dtype(dtype).itemsize, 8)


def _make_bce_kernel(block_rows, n_rows, has_ragged):
    """Kernel factory closing over static sizes."""

    def _vreg_partial(l):
        # Fold (block_rows, 128) -> (8, 128) with elementwise vreg adds (VPU only).
        return jnp.sum(l.reshape(block_rows // 8, 8, _LANES), axis=0)

    def kernel(x_ref, t_ref, o_ref, acc_ref):
        c = pl.program_id(0)            # core-split (parallel) axis
        i = pl.program_id(1)            # reduction (arbitrary) axis
        nb = pl.num_programs(1)

        @pl.when(i == 0)
        def _():
            acc_ref[...] = jnp.zeros_like(acc_ref)

        x = x_ref[...].astype(jnp.float32)
        t = t_ref[...].astype(jnp.float32)

        # Numerically stable BCE with logits:
        #   loss(x, t) = max(x, 0) - x*t + log(1 + exp(-|x|))
        loss = jnp.maximum(x, 0.0) - x * t + jnp.log1p(jnp.exp(-jnp.abs(x)))

        if has_ragged:
            # Only the globally-last block over-hangs the array; its OOB rows
            # hold unspecified VMEM, so they must be select-masked.  All other
            # steps take the mask-free path.
            is_last = jnp.logical_and(c == pl.num_programs(0) - 1, i == nb - 1)

            @pl.when(jnp.logical_not(is_last))
            def _():
                acc_ref[...] += _vreg_partial(loss)

            @pl.when(is_last)
            def _():
                row = lax.broadcasted_iota(jnp.int32, (block_rows, _LANES), 0)
                g_row = (c * nb + i) * block_rows + row      # row index only (no overflow)
                acc_ref[...] += _vreg_partial(jnp.where(g_row < n_rows, loss, 0.0))
        else:
            acc_ref[...] += _vreg_partial(loss)

        @pl.when(i == nb - 1)
        def _():
            # Lane-dense (8,128) partial per core; final reduce + divide in JAX glue.
            o_ref[...] = acc_ref[...].reshape(1, 8, _LANES)

    return kernel


def bce_with_logits(out, tgt):
    """Matches BCE.forward(out, tgt) from the PyTorch module (mean reduction)."""
    x = out.reshape(-1)
    t = tgt.reshape(-1)
    assert x.shape[0] == t.shape[0], "target numel must match logits numel"
    n_elem = x.shape[0]

    # Ship native dtypes and cast in-kernel (no wrapper HBM sweep).
    # bool -> int8 keeps targets at 1 byte/elem; exotic widths fall back to f32.
    if t.dtype == jnp.bool_:
        t = t.astype(jnp.int8)
    elif jnp.dtype(t.dtype).itemsize > 4:
        t = t.astype(jnp.float32)
    if not (jnp.issubdtype(x.dtype, jnp.floating) and jnp.dtype(x.dtype).itemsize <= 4):
        x = x.astype(jnp.float32)

    # Lane alignment: pad only the (<128-elem) tail.  Pad slots use
    # (x=-30000, t=0), which contribute exactly 0 loss -> no fixup needed.
    # TODO(synk): for huge inputs with n_elem % 128 != 0 this still costs one
    # pad copy; a 1-D BlockSpec would avoid it but complicates the layout.
    lane_pad = (-n_elem) % _LANES
    if lane_pad:
        x = jnp.pad(x, (0, lane_pad), constant_values=_PAD_LOGIT)
        t = jnp.pad(t, (0, lane_pad))
    n_rows = (n_elem + lane_pad) // _LANES
    x2 = x.reshape(n_rows, _LANES)
    t2 = t.reshape(n_rows, _LANES)

    align = max(_sublane(x2.dtype), _sublane(t2.dtype))   # always a multiple of 8

    # Megacore split (v7x); harmless 2-step serial grid on v5e/v6e.
    split = 2 if n_rows >= _SPLIT_MIN_ROWS else 1
    rows_per_core = _cdiv(n_rows, split)
    nb = _cdiv(rows_per_core, _MAX_BLOCK_ROWS)
    block_rows = _round_up(_cdiv(rows_per_core, nb), align)

    if block_rows > n_rows:
        # Tiny input (< one aligned block): pad rows with zero-loss values.
        row_pad = block_rows - n_rows
        x2 = jnp.pad(x2, ((0, row_pad), (0, 0)), constant_values=_PAD_LOGIT)
        t2 = jnp.pad(t2, ((0, row_pad), (0, 0)))
        n_rows = block_rows

    total_blocks = split * nb
    has_ragged = total_blocks * block_rows != n_rows

    kernel = _make_bce_kernel(block_rows, n_rows, has_ragged)

    partials = pl.pallas_call(
        kernel,
        out_shape=jax.ShapeDtypeStruct((split, 8, _LANES), jnp.float32),
        grid_spec=pltpu.PrefetchScalarGridSpec(
            num_scalar_prefetch=0,
            grid=(split, nb),
            in_specs=[
                pl.BlockSpec((block_rows, _LANES), lambda c, i: (c * nb + i, 0)),
                pl.BlockSpec((block_rows, _LANES), lambda c, i: (c * nb + i, 0)),
            ],
            out_specs=pl.BlockSpec((1, 8, _LANES), lambda c, i: (c, 0, 0)),
            scratch_shapes=[pltpu.VMEM((8, _LANES), jnp.float32)],
        ),
        compiler_params=pltpu.CompilerParams(
            dimension_semantics=("parallel", "arbitrary"),
        ),
    )(x2, t2)

    return (jnp.sum(partials) / jnp.float32(n_elem)).astype(jnp.float32)


def _ref_bce(o, tg):
    xx = o.reshape(-1).astype(jnp.float32)
    tt = tg.reshape(-1).astype(jnp.float32)
    return jnp.mean(jnp.maximum(xx, 0.0) - xx * tt + jnp.log1p(jnp.exp(-jnp.abs(xx))))


if __name__ == "__main__":
    key = jax.random.PRNGKey(0)
    k1, k2 = jax.random.split(key)

    # Logits (N, 1) and integer labels (N,) — consistent with tgt.view(-1, 1).
    N = 2048
    out = jax.random.normal(k1, (N, 1), dtype=jnp.float32)
    tgt = jax.random.bernoulli(k2, 0.5, (N,)).astype(jnp.int32)

    loss = bce_with_logits(out, tgt)
    jax.block_until_ready(loss)
    assert jnp.allclose(loss, _ref_bce(out, tgt), rtol=1e-5, atol=1e-6), (
        loss, _ref_bce(out, tgt))

    # Non-multiple-of-128 size with float targets: exercises the zero-loss
    # lane-tail padding path.
    k3, k4 = jax.random.split(k2)
    N2 = 1000
    out2 = jax.random.normal(k3, (N2, 1), dtype=jnp.float32)
    tgt2 = jax.random.bernoulli(k4, 0.5, (N2,)).astype(jnp.float32)
    loss2 = bce_with_logits(out2, tgt2)
    jax.block_until_ready(loss2)
    assert jnp.allclose(loss2, _ref_bce(out2, tgt2), rtol=1e-5, atol=1e-6), (
        loss2, _ref_bce(out2, tgt2))

    # Larger odd size: exercises the core-split grid and the gated ragged-row
    # mask on the final block.
    k5, k6 = jax.random.split(k4)
    N3 = 38450
    out3 = jax.random.normal(k5, (N3, 1), dtype=jnp.float32)
    tgt3 = jax.random.bernoulli(k6, 0.5, (N3,)).astype(jnp.int32)
    loss3 = bce_with_logits(out3, tgt3)
    jax.block_until_ready(loss3)
    assert jnp.allclose(loss3, _ref_bce(out3, tgt3), rtol=3e-5, atol=1e-6), (
        loss3, _ref_bce(out3, tgt3))

    print("KERNEL_OK")
</pallas_src>

<mosaic_0001>
module attributes {stable_mosaic.version = 11 : i64} {
  func.func @kernel(%arg0: i32, %arg1: i32, %arg2: memref<16x128xf32, #tpu.memory_space<vmem>>, %arg3: memref<16x128xi32, #tpu.memory_space<vmem>>, %arg4: memref<1x8x128xf32, #tpu.memory_space<vmem>>, %arg5: memref<8x128xf32, #tpu.memory_space<vmem>>) attributes {dimension_semantics = [#tpu.dimension_semantics<parallel>, #tpu.dimension_semantics<arbitrary>], iteration_bounds = array<i64: 1, 1>, scalar_prefetch = 0 : i64, scratch_operands = 1 : i64, tpu.core_type = #tpu.core_type<tc>, window_params = [{transform_indices = @transform_0, window_bounds = array<i64: 16, 128>}, {transform_indices = @transform_1, window_bounds = array<i64: 16, 128>}, {transform_indices = @transform_2, window_bounds = array<i64: 1, 8, 128>}]} {
    %c0_i32 = arith.constant 0 : i32
    %0 = arith.cmpi eq, %arg1, %c0_i32 : i32
    %1 = arith.extui %0 : i1 to i32
    %c0_i32_0 = arith.constant 0 : i32
    %2 = arith.cmpi ne, %1, %c0_i32_0 : i32
    scf.if %2 {
      %cst_12 = arith.constant 0.000000e+00 : f32
      %24 = vector.broadcast %cst_12 : f32 to vector<8x128xf32>
      %c0_13 = arith.constant 0 : index
      %c0_14 = arith.constant 0 : index
      %25 = vector.load %arg5[%c0_13, %c0_14] : memref<8x128xf32, #tpu.memory_space<vmem>>, vector<8x128xf32>
      tpu.vector_store %arg5[%c0_13, %c0_14], %24 {strides = array<i32>} : memref<8x128xf32, #tpu.memory_space<vmem>>, vector<8x128xf32>,
    } else {
    }
    %c0 = arith.constant 0 : index
    %c0_1 = arith.constant 0 : index
    %3 = vector.load %arg2[%c0, %c0_1] : memref<16x128xf32, #tpu.memory_space<vmem>>, vector<16x128xf32>
    %c0_2 = arith.constant 0 : index
    %c0_3 = arith.constant 0 : index
    %4 = vector.load %arg3[%c0_2, %c0_3] : memref<16x128xi32, #tpu.memory_space<vmem>>, vector<16x128xi32>
    %5 = arith.sitofp %4 : vector<16x128xi32> to vector<16x128xf32>
    %cst = arith.constant 0.000000e+00 : f32
    %6 = vector.broadcast %cst : f32 to vector<16x128xf32>
    %7 = arith.maximumf %3, %6 : vector<16x128xf32>
    %8 = arith.mulf %3, %5 : vector<16x128xf32>
    %9 = arith.subf %7, %8 : vector<16x128xf32>
    %10 = math.absf %3 : vector<16x128xf32>
    %cst_4 = arith.constant 0.000000e+00 : f32
    %11 = vector.broadcast %cst_4 : f32 to vector<16x128xf32>
    %12 = arith.subf %11, %10 : vector<16x128xf32>
    %13 = math.exp %12 : vector<16x128xf32>
    %14 = math.log1p %13 : vector<16x128xf32>
    %15 = arith.addf %9, %14 : vector<16x128xf32>
    %c0_5 = arith.constant 0 : index
    %c0_6 = arith.constant 0 : index
    %16 = vector.load %arg5[%c0_5, %c0_6] : memref<8x128xf32, #tpu.memory_space<vmem>>, vector<8x128xf32>
    %17 = vector.shape_cast %15 : vector<16x128xf32> to vector<2x8x128xf32>
    %cst_7 = arith.constant dense<0.000000e+00> : vector<8x128xf32>
    %18 = vector.multi_reduction <add>, %17, %cst_7 [0] : vector<2x8x128xf32> to vector<8x128xf32>
    %19 = arith.addf %16, %18 : vector<8x128xf32>
    %c0_8 = arith.constant 0 : index
    %c0_9 = arith.constant 0 : index
    %20 = vector.load %arg5[%c0_8, %c0_9] : memref<8x128xf32, #tpu.memory_space<vmem>>, vector<8x128xf32>
    tpu.vector_store %arg5[%c0_8, %c0_9], %19 {strides = array<i32>} : memref<8x128xf32, #tpu.memory_space<vmem>>, vector<8x128xf32>,
    %c0_i32_10 = arith.constant 0 : i32
    %21 = arith.cmpi eq, %arg1, %c0_i32_10 : i32
    %22 = arith.extui %21 : i1 to i32
    %c0_i32_11 = arith.constant 0 : i32
    %23 = arith.cmpi ne, %22, %c0_i32_11 : i32
    scf.if %23 {
      %c0_12 = arith.constant 0 : index
      %c0_13 = arith.constant 0 : index
      %24 = vector.load %arg5[%c0_12, %c0_13] : memref<8x128xf32, #tpu.memory_space<vmem>>, vector<8x128xf32>
      %25 = vector.shape_cast %24 : vector<8x128xf32> to vector<1x8x128xf32>
      %c0_14 = arith.constant 0 : index
      %c0_15 = arith.constant 0 : index
      %c0_16 = arith.constant 0 : index
      %26 = vector.load %arg4[%c0_14, %c0_15, %c0_16] : memref<1x8x128xf32, #tpu.memory_space<vmem>>, vector<1x8x128xf32>
      tpu.vector_store %arg4[%c0_14, %c0_15, %c0_16], %25 {strides = array<i32>} : memref<1x8x128xf32, #tpu.memory_space<vmem>>, vector<1x8x128xf32>,
    } else {
    }
    return
  }
  func.func @transform_0(%arg0: i32, %arg1: i32) -> (i32, i32) {
    %c1_i32 = arith.constant 1 : i32
    %0 = arith.muli %arg0, %c1_i32 : i32
    %1 = arith.addi %0, %arg1 : i32
    %c0_i32 = arith.constant 0 : i32
    %c0_i32_0 = arith.constant 0 : i32
    return %1, %c0_i32 : i32, i32
  }
  func.func @transform_1(%arg0: i32, %arg1: i32) -> (i32, i32) {
    %c1_i32 = arith.constant 1 : i32
    %0 = arith.muli %arg0, %c1_i32 : i32
    %1 = arith.addi %0, %arg1 : i32
    %c0_i32 = arith.constant 0 : i32
    %c0_i32_0 = arith.constant 0 : i32
    return %1, %c0_i32 : i32, i32
  }
  func.func @transform_2(%arg0: i32, %arg1: i32) -> (i32, i32, i32) {
    %c0_i32 = arith.constant 0 : i32
    %c0_i32_0 = arith.constant 0 : i32
    %c0_i32_1 = arith.constant 0 : i32
    return %arg0, %c0_i32, %c0_i32_0 : i32, i32, i32
  }
}

</mosaic_0001>

<llo_original>
// kernel: tpu_custom_call.1
$region0: #{tpu_custom_call.1}
  #allocation0 [shape = 'u32[]', space=smem, size = 0x4, offset = 0x4, fixed_abs, tag = 'smem constant byte address 0x4 - core index']
  #allocation1 [shape = 'u32[144,128]{1,0:T(1,128)}', space=vmem, size = 0x12000, scoped, tag = 'internal scratch']
  #allocation2 [shape = 'f32[8,128]{1,0:T(8,128)}', space=vmem, size = 0x1000, scoped, tag = 'scratch operand']
  %s0 = inlined_call_operand.hbm [shape: f32[16,128], index: 0, kind: input, shape index: {}]
  %s1 = inlined_call_operand.hbm [shape: s32[16,128], index: 1, kind: input, shape index: {}]
  %s2 = inlined_call_operand.hbm [shape: f32[1,8,128], index: 2, kind: output, shape index: {}]
  %s3 = sld [smem:[#allocation0]]
  $region34: #{tpu_custom_call.1} parent=0
    _
  %s5 = ssub.s32 1, %s3
  %s6 = scalar_select 0, %s5, %s3
  $region1: #{tpu_custom_call.1} parent=0
    #allocation3 [shape = 'u8[8192]{0}', space=vmem, size = 0x2000, scoped, tag = 'input window, operand 0, single buffered']
    #allocation4 [shape = 's32[1]{0}', space=sflag, size = 0x4, scoped, tag = 'scoped memory for tpu_custom_call.1']
    #allocation5 [shape = 's32[1]{0}', space=sflag, size = 0x4, scoped, tag = 'scoped memory for tpu_custom_call.1']
    #allocation6 [shape = 'u8[8192]{0}', space=vmem, size = 0x2000, scoped, tag = 'input window, operand 1, single buffered']
    #allocation7 [shape = 's32[1]{0}', space=sflag, size = 0x4, scoped, tag = 'scoped memory for tpu_custom_call.1']
    #allocation8 [shape = 'u8[4096]{0}', space=vmem, size = 0x1000, scoped, tag = 'output window, operand 0, single buffered']
    %7 = vsyncpa [#allocation4], 0
    %8 = vsyncpa [#allocation7], 0
    %9 = vsyncpa [#allocation5], 0
    // Predicated region
    $region2: #{tpu_custom_call.1} parent=1 // pred_check
      _
    $region3: #{tpu_custom_call.1} parent=1 // pred_check_branch
      %11 = sbr.rel (0) target = $region5
    $region4: #{tpu_custom_call.1} parent=1 // pred_region
      %s12 = sadd.s32 0, 0
      %s13 = smul.u32 2, %s12
      %s15 = ssub.s32 256, 256
      %16 = vsyncadd [#allocation4], %s15
      %s17 = smul.addr %s13, 128
      %s18 = scalar_lea.hbm %s0, %s17
      %s19 = sshll.u32 [#allocation3], 4
      %s20 = int_to_ptr.vmem [resolvable:$true] %s19
      %25 = dma.hbm_to_vmem [thread:$0]  %s18, 256, %s20, [#allocation4], 128, 128, 8
    $region5: #{tpu_custom_call.1} parent=1 // pred_fallthru
      _
    // Predicated region
    $region6: #{tpu_custom_call.1} parent=1 // pred_check
      _
    $region7: #{tpu_custom_call.1} parent=1 // pred_check_branch
      %27 = sbr.rel (0) target = $region9
    $region8: #{tpu_custom_call.1} parent=1 // pred_region
      %s28 = sadd.s32 0, 0
      %s29 = smul.u32 2, %s28
      %s31 = ssub.s32 256, 256
      %32 = vsyncadd [#allocation7], %s31
      %s33 = smul.addr %s29, 128
      %s34 = scalar_lea.hbm %s1, %s33
      %s35 = sshll.u32 [#allocation6], 4
      %s36 = int_to_ptr.vmem [resolvable:$true] %s35
      %41 = dma.hbm_to_vmem [thread:$0]  %s34, 256, %s36, [#allocation7], 128, 128, 8
    $region9: #{tpu_custom_call.1} parent=1 // pred_fallthru
      _
    // Predicated region
    $region10: #{tpu_custom_call.1} parent=1 // pred_check
      _
    $region11: #{tpu_custom_call.1} parent=1 // pred_check_branch
      %43 = sbr.rel (0) target = $region13
    $region12: #{tpu_custom_call.1} parent=1 // pred_region
      %44 = dma.done [#allocation4], 256
    $region13: #{tpu_custom_call.1} parent=1 // pred_fallthru
      _
    // Predicated region
    $region14: #{tpu_custom_call.1} parent=1 // pred_check
      _
    $region15: #{tpu_custom_call.1} parent=1 // pred_check_branch
      %46 = sbr.rel (0) target = $region17
    $region16: #{tpu_custom_call.1} parent=1 // pred_region
      %47 = dma.done [#allocation7], 256
    $region17: #{tpu_custom_call.1} parent=1 // pred_fallthru
      _
    %s48 = sadd.s32 0, 0
    %s49 = smul.u32 2, %s48
    %s50 = sadd.s32 0, 0
    %s51 = smul.u32 2, %s50
    %p52 = scmp.eq.s32.totalorder 0, 0
    // Predicated region
    $region18: #{tpu_custom_call.1} parent=1 // pred_check
      %p53 = pneg %p52
    $region19: #{tpu_custom_call.1} parent=1 // pred_check_branch
      %55 = sbr.rel (%p53) target = $region21
    $region20: #{tpu_custom_call.1} parent=1 // pred_region
      %56 = vst [vmem:[#allocation2] sm:$0xff] 0.0
    $region21: #{tpu_custom_call.1} parent=1 // pred_fallthru
      _
    %v57 = vld [vmem:[#allocation3] sm:$0xff]
    %v58 = vld [vmem:[#allocation3 + $0x8] sm:$0xff]
    %v59 = vld [vmem:[#allocation6] sm:$0xff]
    %v60 = vld [vmem:[#allocation6 + $0x8] sm:$0xff]
    %v61 = vcvt.s32.f32 %v59
    %v62 = vcvt.s32.f32 %v60
    %v63 = vmax.f32 %v57, 0.0
    %v64 = vmax.f32 %v58, 0.0
    %v65 = vmul.f32 %v57, %v61
    %v66 = vmul.f32 %v58, %v62
    %v67 = vsub.f32 %v63, %v65
    %v68 = vsub.f32 %v64, %v66
    %v69 = vand.u32 2147483647, %v57
    %v70 = vand.u32 2147483647, %v58
    %v71 = vsub.f32 0.0, %v69
    %v72 = vsub.f32 0.0, %v70
    %v73 = vmul.f32 %v71, 1.442695
    %v74 = vpow.pop %v73
    %v75 = vmul.f32 %v72, 1.442695
    %v76 = vpow.pop %v75
    %v77 = vadd.f32 %v74, 1.0
    %v78 = vlog2.pop %v77
    %v79 = vmul.f32 %v78, 0.6931472
    %v80 = vmul.f32 -0.5, %v74
    %v81 = vadd.f32 %v80, 1.0
    %v82 = vmul.f32 %v81, %v74
    %v83 = vand.u32 2147483647, %v74
    %vm84 = vcmp.lt.f32.partialorder %v83, 0.0004427343
    %v85 = vsel %vm84, %v82, %v79
    %v86 = vadd.f32 %v76, 1.0
    %v87 = vlog2.pop %v86
    %v88 = vmul.f32 %v87, 0.6931472
    %v89 = vmul.f32 -0.5, %v76
    %v90 = vadd.f32 %v89, 1.0
    %v91 = vmul.f32 %v90, %v76
    %v92 = vand.u32 2147483647, %v76
    %vm93 = vcmp.lt.f32.partialorder %v92, 0.0004427343
    %v94 = vsel %vm93, %v91, %v88
    %v95 = vadd.f32 %v67, %v85
    %v96 = vadd.f32 %v68, %v94
    %v97 = vld [vmem:[#allocation2] sm:$0xff]
    %v98 = vadd.f32 %v95, %v96
    %v99 = vadd.f32 %v97, %v98
    %100 = vst [vmem:[#allocation2] sm:$0xff] %v99
    // Predicated region
    $region22: #{tpu_custom_call.1} parent=1 // pred_check
      %p101 = pneg %p52
    $region23: #{tpu_custom_call.1} parent=1 // pred_check_branch
      %103 = sbr.rel (%p101) target = $region25
    $region24: #{tpu_custom_call.1} parent=1 // pred_region
      %v104 = vld [vmem:[#allocation2] sm:$0xff]
      %105 = vst [vmem:[#allocation8] sm:$0xff] %v104
    $region25: #{tpu_custom_call.1} parent=1 // pred_fallthru
      _
    // Predicated region
    $region26: #{tpu_custom_call.1} parent=1 // pred_check
      _
    $region27: #{tpu_custom_call.1} parent=1 // pred_check_branch
      %107 = sbr.rel (0) target = $region29
    $region28: #{tpu_custom_call.1} parent=1 // pred_region
      %s109 = ssub.s32 128, 128
      %110 = vsyncadd [#allocation5], %s109
      %s112 = sshll.u32 [#allocation8], 4
      %s113 = int_to_ptr.vmem [resolvable:$true] %s112
      %115 = dma.vmem_to_hbm [thread:$0]  %s113, 128, %s2, [#allocation5]
    $region29: #{tpu_custom_call.1} parent=1 // pred_fallthru
      _
    // Predicated region
    $region30: #{tpu_custom_call.1} parent=1 // pred_check
      _
    $region31: #{tpu_custom_call.1} parent=1 // pred_check_branch
      %117 = sbr.rel (0) target = $region33
    $region32: #{tpu_custom_call.1} parent=1 // pred_region
      %118 = dma.done [#allocation5], 128
    $region33: #{tpu_custom_call.1} parent=1 // pred_fallthru
      _
    %119 = vsyncpa [#allocation4], 1
    %120 = vsyncpa [#allocation7], 1
    %121 = vsyncpa [#allocation5], 1

</llo_original>
